<compile_context>
chip_gen: v6e
topology: v6e:2x2x1
jax: 0.10.0
libtpu: 0.0.40
codegen_flags: <defaults>
</compile_context>

<pallas_src>
import functools

import numpy as np
import jax
import jax.numpy as jnp
from jax.experimental import pallas as pl
from jax.experimental.pallas import tpu as pltpu

KSIZE = 3   # AvgPool2d kernel size in the module
PAD = 1     # AvgPool2d padding in the module


def _make_kernel(S, C, HOUT, WOUT, has_conv, COUT):
    """Fused avg-pool (+ optional 1x1 conv) kernel for one batch element."""

    def kernel(xph_ref, inv_ref, *rest):
        if has_conv:
            w_ref, o_ref = rest
        else:
            (o_ref,) = rest

        # (S*S*C, Hph, Wph): stride phases stacked along the leading axis.
        xv = xph_ref[0]

        # 3x3 window sum: 9 contiguous static slices (stride folded into the
        # phase decomposition done in the wrapper).
        acc = None
        for kh in range(KSIZE):
            p, bi = kh % S, kh // S
            for kw in range(KSIZE):
                q, bj = kw % S, kw // S
                base = (p * S + q) * C
                patch = xv[base:base + C, bi:bi + HOUT, bj:bj + WOUT]
                acc = patch if acc is None else acc + patch

        # count_include_pad=False: multiply by the precomputed 1/valid_count
        # map (broadcasts (HOUT, WOUT) over the leading channel axis).
        pooled = acc * inv_ref[...]                       # (C, HOUT, WOUT)

        if has_conv:
            # Pointwise 1x1 conv: contract over C. C is tiny (4), so this is a
            # 4-step unrolled VPU MAC; an MXU dot would need lane-axis
            # reshapes/transposes that cost more than they save at this size.
            w = w_ref[...]                                # (COUT, C)
            out = jnp.zeros((COUT, HOUT, WOUT), jnp.float32)
            for c in range(C):
                wc = w[:, c:c + 1].reshape(COUT, 1, 1)    # hoisted per-c slice
                out = out + wc * pooled[c:c + 1]
            o_ref[0] = out.astype(o_ref.dtype)
        else:
            o_ref[0] = pooled.astype(o_ref.dtype)

    return kernel


@functools.partial(jax.jit, static_argnames=("stride", "double"))
def avgpool_forward(x_nchw, w_pw=None, *, stride=1, double=False):
    """Mirrors AvgPool.forward. x_nchw: (N, C, H, W) f32; w_pw: (COUT, C) or None."""
    N, C, H, W = x_nchw.shape
    S = int(stride)
    has_conv = (S == 2) or double
    if has_conv:
        assert w_pw is not None, "conv1x1 weight required when stride==2 or double"
        COUT = w_pw.shape[0]
    else:
        COUT = C

    HOUT = (H + 2 * PAD - KSIZE) // S + 1
    WOUT = (W + 2 * PAD - KSIZE) // S + 1

    # Pad, then split into S*S stride phases (phase (p, q) = xpad[:, :, p::S, q::S])
    # so the kernel only needs contiguous, unstrided slices.  Pure layout plumbing.
    HP, WP = H + 2 * PAD, W + 2 * PAD
    Hph, Wph = -(-HP // S), -(-WP // S)
    xpad = jnp.pad(x_nchw, ((0, 0), (0, 0),
                            (PAD, PAD + Hph * S - HP),
                            (PAD, PAD + Wph * S - WP)))
    xph = xpad.reshape(N, C, Hph, S, Wph, S)
    xph = jnp.transpose(xph, (0, 3, 5, 1, 2, 4)).reshape(N, S * S * C, Hph, Wph)

    # count_include_pad=False -> reciprocal of the per-position valid count
    # (compile-time constant; the 3x3 window count is separable row x col).
    r = np.arange(HOUT) * S - PAD
    c = np.arange(WOUT) * S - PAD
    rcnt = sum(((r + k >= 0) & (r + k < H)).astype(np.float32) for k in range(KSIZE))
    ccnt = sum(((c + k >= 0) & (c + k < W)).astype(np.float32) for k in range(KSIZE))
    inv_cnt = jnp.asarray(1.0 / (rcnt[:, None] * ccnt[None, :]), dtype=jnp.float32)

    kernel = _make_kernel(S, C, HOUT, WOUT, has_conv, COUT)

    in_specs = [
        pl.BlockSpec((1, S * S * C, Hph, Wph), lambda n: (n, 0, 0, 0)),
        pl.BlockSpec((HOUT, WOUT), lambda n: (0, 0)),
    ]
    args = [xph, inv_cnt]
    if has_conv:
        in_specs.append(pl.BlockSpec((COUT, C), lambda n: (0, 0)))
        args.append(w_pw)

    return pl.pallas_call(
        kernel,
        out_shape=jax.ShapeDtypeStruct((N, COUT, HOUT, WOUT), x_nchw.dtype),
        grid=(N,),
        in_specs=in_specs,
        out_specs=pl.BlockSpec((1, COUT, HOUT, WOUT), lambda n: (n, 0, 0, 0)),
        compiler_params=pltpu.CompilerParams(
            dimension_semantics=("parallel",)),
    )(*args)


# ----------------------- Pure-JAX reference (for checking) -------------------
def avgpool_reference(x, w_pw=None, *, stride=1, double=False):
    sums = jax.lax.reduce_window(
        x, 0.0, jax.lax.add, (1, 1, KSIZE, KSIZE), (1, 1, stride, stride),
        padding=((0, 0), (0, 0), (PAD, PAD), (PAD, PAD)))
    cnts = jax.lax.reduce_window(
        jnp.ones_like(x), 0.0, jax.lax.add, (1, 1, KSIZE, KSIZE),
        (1, 1, stride, stride),
        padding=((0, 0), (0, 0), (PAD, PAD), (PAD, PAD)))
    y = sums / cnts
    if stride == 2 or double:
        y = jax.lax.conv_general_dilated(
            y, w_pw[:, :, None, None], (1, 1), ((0, 0), (0, 0)),
            dimension_numbers=("NCHW", "OIHW", "NCHW"))
    return y


# ---------------------------------- Main --------------------------------------
if __name__ == "__main__":
    key = jax.random.PRNGKey(0)
    kx, kw = jax.random.split(key, 2)

    N, CIN, H, W = 2, 4, 16, 16
    COUT = 8
    x = jax.random.normal(kx, (N, CIN, H, W), jnp.float32)
    w_pw = 0.3 * jax.random.normal(kw, (COUT, CIN), jnp.float32)   # torch (COUT,CIN,1,1) squeezed

    configs = [
        dict(stride=1, double=False, w=None),   # plain 3x3 avg pool
        dict(stride=1, double=True,  w=w_pw),   # avg pool + 1x1 conv
        dict(stride=2, double=False, w=w_pw),   # strided avg pool + 1x1 conv
    ]
    for cfg in configs:
        out = avgpool_forward(x, cfg["w"], stride=cfg["stride"], double=cfg["double"])
        out = jax.block_until_ready(out)
        ref = avgpool_reference(x, cfg["w"], stride=cfg["stride"], double=cfg["double"])
        assert out.shape == ref.shape, (out.shape, ref.shape)
        if not jnp.allclose(out, ref, atol=1e-4, rtol=1e-3):
            max_err = float(jnp.max(jnp.abs(out - ref)))
            raise AssertionError(
                f"Pallas AvgPool mismatch (stride={cfg['stride']}, "
                f"double={cfg['double']}), max abs err = {max_err}")

    print("KERNEL_OK")
</pallas_src>

<mosaic_0001>
module attributes {stable_mosaic.version = 11 : i64} {
  func.func @kernel(%arg0: i32, %arg1: memref<1x4x18x18xf32, #tpu.memory_space<vmem>>, %arg2: memref<16x16xf32, #tpu.memory_space<vmem>>, %arg3: memref<1x4x16x16xf32, #tpu.memory_space<vmem>>) attributes {dimension_semantics = [#tpu.dimension_semantics<parallel>], iteration_bounds = array<i64: 2>, scalar_prefetch = 0 : i64, scratch_operands = 0 : i64, tpu.core_type = #tpu.core_type<tc>, window_params = [{transform_indices = @transform_0, window_bounds = array<i64: 1, 4, 18, 18>}, {pipeline_mode = #tpu.pipeline_mode<synchronous>, transform_indices = @transform_1, window_bounds = array<i64: 16, 16>}, {transform_indices = @transform_2, window_bounds = array<i64: 1, 4, 16, 16>}]} {
    %c0 = arith.constant 0 : index
    %c0_0 = arith.constant 0 : index
    %c0_1 = arith.constant 0 : index
    %c0_2 = arith.constant 0 : index
    %0 = vector.load %arg1[%c0, %c0_0, %c0_1, %c0_2] : memref<1x4x18x18xf32, #tpu.memory_space<vmem>>, vector<1x4x18x18xf32>
    %1 = vector.shape_cast %0 : vector<1x4x18x18xf32> to vector<4x18x18xf32>
    %2 = vector.extract_strided_slice %1 {offsets = [0, 0, 0], sizes = [4, 16, 16], strides = [1, 1, 1]} : vector<4x18x18xf32> to vector<4x16x16xf32>
    %3 = vector.extract_strided_slice %1 {offsets = [0, 0, 1], sizes = [4, 16, 16], strides = [1, 1, 1]} : vector<4x18x18xf32> to vector<4x16x16xf32>
    %4 = arith.addf %2, %3 : vector<4x16x16xf32>
    %5 = vector.extract_strided_slice %1 {offsets = [0, 0, 2], sizes = [4, 16, 16], strides = [1, 1, 1]} : vector<4x18x18xf32> to vector<4x16x16xf32>
    %6 = arith.addf %4, %5 : vector<4x16x16xf32>
    %7 = vector.extract_strided_slice %1 {offsets = [0, 1, 0], sizes = [4, 16, 16], strides = [1, 1, 1]} : vector<4x18x18xf32> to vector<4x16x16xf32>
    %8 = arith.addf %6, %7 : vector<4x16x16xf32>
    %9 = vector.extract_strided_slice %1 {offsets = [0, 1, 1], sizes = [4, 16, 16], strides = [1, 1, 1]} : vector<4x18x18xf32> to vector<4x16x16xf32>
    %10 = arith.addf %8, %9 : vector<4x16x16xf32>
    %11 = vector.extract_strided_slice %1 {offsets = [0, 1, 2], sizes = [4, 16, 16], strides = [1, 1, 1]} : vector<4x18x18xf32> to vector<4x16x16xf32>
    %12 = arith.addf %10, %11 : vector<4x16x16xf32>
    %13 = vector.extract_strided_slice %1 {offsets = [0, 2, 0], sizes = [4, 16, 16], strides = [1, 1, 1]} : vector<4x18x18xf32> to vector<4x16x16xf32>
    %14 = arith.addf %12, %13 : vector<4x16x16xf32>
    %15 = vector.extract_strided_slice %1 {offsets = [0, 2, 1], sizes = [4, 16, 16], strides = [1, 1, 1]} : vector<4x18x18xf32> to vector<4x16x16xf32>
    %16 = arith.addf %14, %15 : vector<4x16x16xf32>
    %17 = vector.extract_strided_slice %1 {offsets = [0, 2, 2], sizes = [4, 16, 16], strides = [1, 1, 1]} : vector<4x18x18xf32> to vector<4x16x16xf32>
    %18 = arith.addf %16, %17 : vector<4x16x16xf32>
    %c0_3 = arith.constant 0 : index
    %c0_4 = arith.constant 0 : index
    %19 = vector.load %arg2[%c0_3, %c0_4] : memref<16x16xf32, #tpu.memory_space<vmem>>, vector<16x16xf32>
    %20 = vector.shape_cast %19 : vector<16x16xf32> to vector<1x16x16xf32>
    %21 = vector.broadcast %20 : vector<1x16x16xf32> to vector<4x16x16xf32>
    %22 = arith.mulf %18, %21 : vector<4x16x16xf32>
    %c0_5 = arith.constant 0 : index
    %c0_6 = arith.constant 0 : index
    %c0_7 = arith.constant 0 : index
    %c0_8 = arith.constant 0 : index
    %23 = vector.load %arg3[%c0_5, %c0_6, %c0_7, %c0_8] : memref<1x4x16x16xf32, #tpu.memory_space<vmem>>, vector<1x4x16x16xf32>
    %24 = vector.shape_cast %23 : vector<1x4x16x16xf32> to vector<4x16x16xf32>
    %25 = vector.shape_cast %22 : vector<4x16x16xf32> to vector<1x4x16x16xf32>
    tpu.vector_store %arg3[%c0_5, %c0_6, %c0_7, %c0_8], %25 {strides = array<i32>} : memref<1x4x16x16xf32, #tpu.memory_space<vmem>>, vector<1x4x16x16xf32>,
    return
  }
  func.func @transform_0(%arg0: i32) -> (i32, i32, i32, i32) {
    %c0_i32 = arith.constant 0 : i32
    %c0_i32_0 = arith.constant 0 : i32
    %c0_i32_1 = arith.constant 0 : i32
    %c0_i32_2 = arith.constant 0 : i32
    return %arg0, %c0_i32, %c0_i32_0, %c0_i32_1 : i32, i32, i32, i32
  }
  func.func @transform_1(%arg0: i32) -> (i32, i32) {
    %c0_i32 = arith.constant 0 : i32
    %c0_i32_0 = arith.constant 0 : i32
    %c0_i32_1 = arith.constant 0 : i32
    return %c0_i32, %c0_i32_0 : i32, i32
  }
  func.func @transform_2(%arg0: i32) -> (i32, i32, i32, i32) {
    %c0_i32 = arith.constant 0 : i32
    %c0_i32_0 = arith.constant 0 : i32
    %c0_i32_1 = arith.constant 0 : i32
    %c0_i32_2 = arith.constant 0 : i32
    return %arg0, %c0_i32, %c0_i32_0, %c0_i32_1 : i32, i32, i32, i32
  }
}

</mosaic_0001>

<llo_original>
// kernel: avgpool_forward.1
$region0: #{avgpool_forward.1}
  #allocation0 [shape = 'u32[]', space=smem, size = 0x4, offset = 0x4, fixed_abs, tag = 'smem constant byte address 0x4 - core index']
  #allocation1 [shape = 'u32[144,128]{1,0:T(1,128)}', space=vmem, size = 0x12000, scoped, tag = 'internal scratch']
  %s0 = inlined_call_operand.vmem [shape: f32[2,4,18,18], index: 0, kind: input, shape index: {}]
  %s1 = inlined_call_operand.vmem [shape: f32[16,16], index: 1, kind: input, shape index: {}]
  %s2 = inlined_call_operand.hbm [shape: f32[2,4,16,16], index: 2, kind: output, shape index: {}]
  %s3 = sld [smem:[#allocation0]]
  $region41: #{avgpool_forward.1} parent=0
    _
  %s5 = ssub.s32 1, %s3
  %s6 = scalar_select 0, %s5, %s3
  $region1: #{avgpool_forward.1} parent=0
    #allocation2 [shape = 'u8[65536]{0}', space=vmem, size = 0x10000, scoped, tag = 'output window, operand 0']
    #allocation3 [shape = 's32[2]{0}', space=sflag, size = 0x8, scoped, tag = 'scoped memory for avgpool_forward.1']
    %7 = vsyncpa [#allocation3], 0
    %s8 = scalar_lea.sflag [#allocation3], 1
    %9 = vsyncpa %s8, 0
    loop: start=0, step=1, limit=4
    $region2: #{avgpool_forward.1} parent=1 // loop_pre_header
      _
    $region3: #{avgpool_forward.1} parent=1 // loop_header
      %s11 = sphi 0, %s15
      %p12 = scmp.ge.s32.totalorder %s11, 4
      %s21 = sphi 0, %s23
      %s24 = sphi 0, %s21
      %s25 = sphi 0, %s24
      %s41 = sphi 0, %s25
      %s45 = sphi 0, %s45
      %s47 = sphi 0, %s45
      %s48 = sphi 0, %s47
      %s62 = sphi 0, %s48
      %s68 = sphi 0, %s70
      %s71 = sphi 0, %s68
      %s72 = sphi 0, %s71
      %s88 = sphi 0, %s72
    $region4: #{avgpool_forward.1} parent=1 // loop_header_branch
      %14 = sbr.rel (%p12) target = $region8
    $region5: #{avgpool_forward.1} parent=1 // loop_body
      %s16 = ssub.s32 %s11, 1
      %s17 = ssub.s32 %s11, 2
      %s18 = sadd.s32 %s11, 1
      %s19 = ssub.s32 %s11, %s18
      %p20 = scmp.eq.s32.totalorder %s19, 0
      %s22 = sadd.s32 %s21, 1
      %s23 = scalar_select %p20, %s21, %s22
      %p26 = pneg %p20
      %p27 = scmp.eq.s32.totalorder %s11, 1
      %p28 = por %p26, %p27
      %p29 = scmp.ne.s32.totalorder %s21, %s24
      %p30 = scmp.eq.s32.totalorder %s11, 0
      %p31 = por %p29, %p30
      %p32 = scmp.ne.s32.totalorder %s21, %s24
      %p33 = scmp.eq.s32.totalorder %s16, 1
      %p34 = por %p32, %p33
      %p35 = scmp.ne.s32.totalorder %s24, %s25
      %p36 = scmp.eq.s32.totalorder %s16, 0
      %p37 = por %p35, %p36
      %p38 = scmp.ne.s32.totalorder %s24, %s25
      %p39 = scmp.eq.s32.totalorder %s17, 1
      %p40 = por %p38, %p39
      %p42 = scmp.ne.s32.totalorder %s25, %s41
      %p43 = scmp.eq.s32.totalorder %s17, 0
      %p44 = por %p42, %p43
      %s46 = sadd.s32 %s45, 1
      %p49 = scmp.eq.s32.totalorder %s11, 1
      %p50 = scmp.ne.s32.totalorder %s45, %s47
      %p51 = scmp.eq.s32.totalorder %s11, 0
      %p52 = por %p50, %p51
      %p53 = scmp.ne.s32.totalorder %s45, %s47
      %p54 = scmp.eq.s32.totalorder %s16, 1
      %p55 = por %p53, %p54
      %p56 = scmp.ne.s32.totalorder %s47, %s48
      %p57 = scmp.eq.s32.totalorder %s16, 0
      %p58 = por %p56, %p57
      %p59 = scmp.ne.s32.totalorder %s47, %s48
      %p60 = scmp.eq.s32.totalorder %s17, 1
      %p61 = por %p59, %p60
      %p63 = scmp.ne.s32.totalorder %s48, %s62
      %p64 = scmp.eq.s32.totalorder %s17, 0
      %p65 = por %p63, %p64
      %s66 = ssub.s32 %s11, %s18
      %p67 = scmp.eq.s32.totalorder %s66, 0
      %s69 = sadd.s32 %s68, 1
      %s70 = scalar_select %p67, %s68, %s69
      %p73 = pneg %p67
      %p74 = scmp.eq.s32.totalorder %s11, 1
      %p75 = por %p73, %p74
      %p76 = scmp.ne.s32.totalorder %s68, %s71
      %p77 = scmp.eq.s32.totalorder %s11, 0
      %p78 = por %p76, %p77
      %p79 = scmp.ne.s32.totalorder %s68, %s71
      %p80 = scmp.eq.s32.totalorder %s16, 1
      %p81 = por %p79, %p80
      %p82 = scmp.ne.s32.totalorder %s71, %s72
      %p83 = scmp.eq.s32.totalorder %s16, 0
      %p84 = por %p82, %p83
      %p85 = scmp.ne.s32.totalorder %s71, %s72
      %p86 = scmp.eq.s32.totalorder %s17, 1
      %p87 = por %p85, %p86
      %p89 = scmp.ne.s32.totalorder %s72, %s88
      %p90 = scmp.eq.s32.totalorder %s17, 0
      %p91 = por %p89, %p90
      %p92 = scmp.le.s32.totalorder 1, %s11
      %p93 = scmp.lt.s32.totalorder %s11, 3
      %p94 = pnand %p92, %p93
      %p95 = pneg %p94
      // Predicated region
      $region9: #{avgpool_forward.1} parent=5 // pred_check
        _
      $region10: #{avgpool_forward.1} parent=5 // pred_check_branch
        %97 = sbr.rel (%p94) target = $region12
      $region11: #{avgpool_forward.1} parent=5 // pred_region
        %s98 = ssub.s32 %s11, 1
        // Predicated region
        $region13: #{avgpool_forward.1} parent=11 // pred_check
          %p99 = pneg %p58
        $region14: #{avgpool_forward.1} parent=11 // pred_check_branch
          %101 = sbr.rel (%p99) target = $region16
        $region15: #{avgpool_forward.1} parent=11 // pred_region
          _
        $region16: #{avgpool_forward.1} parent=11 // pred_fallthru
          _
      $region12: #{avgpool_forward.1} parent=5 // pred_fallthru
        _
      %p102 = scmp.lt.s32.totalorder %s11, 2
      // Predicated region
      $region17: #{avgpool_forward.1} parent=5 // pred_check
        %p103 = pneg %p102
      $region18: #{avgpool_forward.1} parent=5 // pred_check_branch
        %105 = sbr.rel (%p103) target = $region20
      $region19: #{avgpool_forward.1} parent=5 // pred_region
        // Predicated region
        $region21: #{avgpool_forward.1} parent=19 // pred_check
          %p106 = pneg %p31
        $region22: #{avgpool_forward.1} parent=19 // pred_check_branch
          %108 = sbr.rel (%p106) target = $region24
        $region23: #{avgpool_forward.1} parent=19 // pred_region
          %p109 = scmp.lt.s32.totalorder %s11, 1
          %s110 = scalar_select %p109, %s11, 1
          %s111 = smul.addr %s110, 12
          %s112 = smul.addr %s111, 8
          %s113 = scalar_lea.vmem %s0, %s112
        $region24: #{avgpool_forward.1} parent=19 // pred_fallthru
          _
      $region20: #{avgpool_forward.1} parent=5 // pred_fallthru
        _
      %p114 = scmp.le.s32.totalorder 1, %s11
      %p115 = scmp.lt.s32.totalorder %s11, 3
      %p116 = pnand %p114, %p115
      %p117 = pneg %p116
      // Predicated region
      $region25: #{avgpool_forward.1} parent=5 // pred_check
        _
      $region26: #{avgpool_forward.1} parent=5 // pred_check_branch
        %119 = sbr.rel (%p116) target = $region28
      $region27: #{avgpool_forward.1} parent=5 // pred_region
        %s120 = ssub.s32 %s11, 1
        %p121 = scmp.lt.s32.totalorder %s16, 1
        %s122 = scalar_select %p121, %s16, 1
        %s123 = smul.addr %s122, 12
        %s124 = smul.addr %s123, 8
        %s125 = scalar_lea.vmem %s0, %s124
        %p126 = pneg %p37
        %p127 = pneg %p34
        %p128 = pneg %p58
        %p129 = pneg %p55
        %p130 = pneg %p84
        %p131 = pneg %p81
        %s132 = sand.u32 %s71, 1
        %s133 = scalar_lea.sflag [#allocation3], %s132
        %s134 = sand.u32 %s71, 1
        %s135 = smul.addr %s134, 64
        %s136 = scalar_lea.vmem [#allocation2], %s135
        %p137 = scmp.lt.s32.totalorder %s16, 1
        %s138 = scalar_select %p137, %s16, 1
        %s139 = smul.addr %s138, 12
        %s140 = smul.addr %s139, 8
        %s141 = scalar_lea.vmem %s0, %s140
        %v142 = vld [vmem:[%s141] sm:$0xff]
        %v143 = vld [vmem:[%s141 + $0x8] sm:$0xff]
        %v144 = vld [vmem:[%s141 + $0x10] sm:$0x3]
        %v145 = vld [vmem:[%s141 + $0x18] sm:$0xff]
        %v146 = vld [vmem:[%s141 + $0x20] sm:$0xff]
        %v147 = vld [vmem:[%s141 + $0x28] sm:$0x3]
        %v148 = vld [vmem:[%s141 + $0x30] sm:$0xff]
        %v149 = vld [vmem:[%s141 + $0x38] sm:$0xff]
        %v150 = vld [vmem:[%s141 + $0x40] sm:$0x3]
        %v151 = vld [vmem:[%s141 + $0x48] sm:$0xff]
        %v152 = vld [vmem:[%s141 + $0x50] sm:$0xff]
        %v153 = vld [vmem:[%s141 + $0x58] sm:$0x3]
        %162 = vrot.lane.b32.xlu0 %v142, 127
        %v163 = vpop.permute.xlu0 %162
        %164 = vrot.lane.b32.xlu0 %v143, 127
        %v165 = vpop.permute.xlu0 %164
        %166 = vrot.lane.b32.xlu0 %v145, 127
        %v167 = vpop.permute.xlu0 %166
        %168 = vrot.lane.b32.xlu0 %v146, 127
        %v169 = vpop.permute.xlu0 %168
        %170 = vrot.lane.b32.xlu0 %v148, 127
        %v171 = vpop.permute.xlu0 %170
        %172 = vrot.lane.b32.xlu0 %v149, 127
        %v173 = vpop.permute.xlu0 %172
        %174 = vrot.lane.b32.xlu0 %v151, 127
        %v175 = vpop.permute.xlu0 %174
        %176 = vrot.lane.b32.xlu0 %v152, 127
        %v177 = vpop.permute.xlu0 %176
        %v186 = vadd.f32 %v142, %v163
        %v187 = vadd.f32 %v143, %v165
        %v188 = vadd.f32 %v145, %v167
        %v189 = vadd.f32 %v146, %v169
        %v190 = vadd.f32 %v148, %v171
        %v191 = vadd.f32 %v149, %v173
        %v192 = vadd.f32 %v151, %v175
        %v193 = vadd.f32 %v152, %v177
        %194 = vrot.lane.b32.xlu0 %v142, 126
        %v195 = vpop.permute.xlu0 %194
        %196 = vrot.lane.b32.xlu0 %v143, 126
        %v197 = vpop.permute.xlu0 %196
        %198 = vrot.lane.b32.xlu0 %v145, 126
        %v199 = vpop.permute.xlu0 %198
        %200 = vrot.lane.b32.xlu0 %v146, 126
        %v201 = vpop.permute.xlu0 %200
        %202 = vrot.lane.b32.xlu0 %v148, 126
        %v203 = vpop.permute.xlu0 %202
        %204 = vrot.lane.b32.xlu0 %v149, 126
        %v205 = vpop.permute.xlu0 %204
        %206 = vrot.lane.b32.xlu0 %v151, 126
        %v207 = vpop.permute.xlu0 %206
        %208 = vrot.lane.b32.xlu0 %v152, 126
        %v209 = vpop.permute.xlu0 %208
        %v218 = vadd.f32 %v186, %v195
        %v219 = vadd.f32 %v187, %v197
        %v220 = vadd.f32 %v188, %v199
        %v221 = vadd.f32 %v189, %v201
        %v222 = vadd.f32 %v190, %v203
        %v223 = vadd.f32 %v191, %v205
        %v224 = vadd.f32 %v192, %v207
        %v225 = vadd.f32 %v193, %v209
        %vm230 = vcmask 1046528
        %v231 = vrot.slane %v142, 1
        %v232 = vrot.slane %v143, 1
        %v233 = vsel %vm230, %v231, %v232
        %v234 = vrot.slane %v144, 1
        %v235 = vsel %vm230, %v232, %v234
        %v236 = vrot.slane %v145, 1
        %v237 = vrot.slane %v146, 1
        %v238 = vsel %vm230, %v236, %v237
        %v239 = vrot.slane %v147, 1
        %v240 = vsel %vm230, %v237, %v239
        %v241 = vrot.slane %v148, 1
        %v242 = vrot.slane %v149, 1
        %v243 = vsel %vm230, %v241, %v242
        %v244 = vrot.slane %v150, 1
        %v245 = vsel %vm230, %v242, %v244
        %v246 = vrot.slane %v151, 1
        %v247 = vrot.slane %v152, 1
        %v248 = vsel %vm230, %v246, %v247
        %v249 = vrot.slane %v153, 1
        %v250 = vsel %vm230, %v247, %v249
        %v259 = vadd.f32 %v218, %v233
        %v260 = vadd.f32 %v219, %v235
        %v261 = vadd.f32 %v220, %v238
        %v262 = vadd.f32 %v221, %v240
        %v263 = vadd.f32 %v222, %v243
        %v264 = vadd.f32 %v223, %v245
        %v265 = vadd.f32 %v224, %v248
        %v266 = vadd.f32 %v225, %v250
        %267 = vrot.lane.b32.xlu0 %v233, 127
        %v268 = vpop.permute.xlu0 %267
        %269 = vrot.lane.b32.xlu0 %v235, 127
        %v270 = vpop.permute.xlu0 %269
        %271 = vrot.lane.b32.xlu0 %v238, 127
        %v272 = vpop.permute.xlu0 %271
        %273 = vrot.lane.b32.xlu0 %v240, 127
        %v274 = vpop.permute.xlu0 %273
        %275 = vrot.lane.b32.xlu0 %v243, 127
        %v276 = vpop.permute.xlu0 %275
        %277 = vrot.lane.b32.xlu0 %v245, 127
        %v278 = vpop.permute.xlu0 %277
        %279 = vrot.lane.b32.xlu0 %v248, 127
        %v280 = vpop.permute.xlu0 %279
        %281 = vrot.lane.b32.xlu0 %v250, 127
        %v282 = vpop.permute.xlu0 %281
        %v291 = vadd.f32 %v259, %v268
        %v292 = vadd.f32 %v260, %v270
        %v293 = vadd.f32 %v261, %v272
        %v294 = vadd.f32 %v262, %v274
        %v295 = vadd.f32 %v263, %v276
        %v296 = vadd.f32 %v264, %v278
        %v297 = vadd.f32 %v265, %v280
        %v298 = vadd.f32 %v266, %v282
        %299 = vrot.lane.b32.xlu0 %v233, 126
        %v300 = vpop.permute.xlu0 %299
        %301 = vrot.lane.b32.xlu0 %v235, 126
        %v302 = vpop.permute.xlu0 %301
        %303 = vrot.lane.b32.xlu0 %v238, 126
        %v304 = vpop.permute.xlu0 %303
        %305 = vrot.lane.b32.xlu0 %v240, 126
        %v306 = vpop.permute.xlu0 %305
        %307 = vrot.lane.b32.xlu0 %v243, 126
        %v308 = vpop.permute.xlu0 %307
        %309 = vrot.lane.b32.xlu0 %v245, 126
        %v310 = vpop.permute.xlu0 %309
        %311 = vrot.lane.b32.xlu0 %v248, 126
        %v312 = vpop.permute.xlu0 %311
        %313 = vrot.lane.b32.xlu0 %v250, 126
        %v314 = vpop.permute.xlu0 %313
        %v323 = vadd.f32 %v291, %v300
        %v324 = vadd.f32 %v292, %v302
        %v325 = vadd.f32 %v293, %v304
        %v326 = vadd.f32 %v294, %v306
        %v327 = vadd.f32 %v295, %v308
        %v328 = vadd.f32 %v296, %v310
        %v329 = vadd.f32 %v297, %v312
        %v330 = vadd.f32 %v298, %v314
        %vm331 = vcmask 1045504
        %v332 = vrot.slane %v142, 2
        %v333 = vrot.slane %v143, 2
        %v334 = vsel %vm331, %v332, %v333
        %v335 = vrot.slane %v144, 2
        %v336 = vsel %vm331, %v333, %v335
        %v337 = vrot.slane %v145, 2
        %v338 = vrot.slane %v146, 2
        %v339 = vsel %vm331, %v337, %v338
        %v340 = vrot.slane %v147, 2
        %v341 = vsel %vm331, %v338, %v340
        %v342 = vrot.slane %v148, 2
        %v343 = vrot.slane %v149, 2
        %v344 = vsel %vm331, %v342, %v343
        %v345 = vrot.slane %v150, 2
        %v346 = vsel %vm331, %v343, %v345
        %v347 = vrot.slane %v151, 2
        %v348 = vrot.slane %v152, 2
        %v349 = vsel %vm331, %v347, %v348
        %v350 = vrot.slane %v153, 2
        %v351 = vsel %vm331, %v348, %v350
        %v360 = vadd.f32 %v323, %v334
        %v361 = vadd.f32 %v324, %v336
        %v362 = vadd.f32 %v325, %v339
        %v363 = vadd.f32 %v326, %v341
        %v364 = vadd.f32 %v327, %v344
        %v365 = vadd.f32 %v328, %v346
        %v366 = vadd.f32 %v329, %v349
        %v367 = vadd.f32 %v330, %v351
        %368 = vrot.lane.b32.xlu0 %v334, 127
        %v369 = vpop.permute.xlu0 %368
        %370 = vrot.lane.b32.xlu0 %v336, 127
        %v371 = vpop.permute.xlu0 %370
        %372 = vrot.lane.b32.xlu0 %v339, 127
        %v373 = vpop.permute.xlu0 %372
        %374 = vrot.lane.b32.xlu0 %v341, 127
        %v375 = vpop.permute.xlu0 %374
        %376 = vrot.lane.b32.xlu0 %v344, 127
        %v377 = vpop.permute.xlu0 %376
        %378 = vrot.lane.b32.xlu0 %v346, 127
        %v379 = vpop.permute.xlu0 %378
        %380 = vrot.lane.b32.xlu0 %v349, 127
        %v381 = vpop.permute.xlu0 %380
        %382 = vrot.lane.b32.xlu0 %v351, 127
        %v383 = vpop.permute.xlu0 %382
        %v392 = vadd.f32 %v360, %v369
        %v393 = vadd.f32 %v361, %v371
        %v394 = vadd.f32 %v362, %v373
        %v395 = vadd.f32 %v363, %v375
        %v396 = vadd.f32 %v364, %v377
        %v397 = vadd.f32 %v365, %v379
        %v398 = vadd.f32 %v366, %v381
        %v399 = vadd.f32 %v367, %v383
        %400 = vrot.lane.b32.xlu0 %v334, 126
        %v401 = vpop.permute.xlu0 %400
        %402 = vrot.lane.b32.xlu0 %v336, 126
        %v403 = vpop.permute.xlu0 %402
        %404 = vrot.lane.b32.xlu0 %v339, 126
        %v405 = vpop.permute.xlu0 %404
        %406 = vrot.lane.b32.xlu0 %v341, 126
        %v407 = vpop.permute.xlu0 %406
        %408 = vrot.lane.b32.xlu0 %v344, 126
        %v409 = vpop.permute.xlu0 %408
        %410 = vrot.lane.b32.xlu0 %v346, 126
        %v411 = vpop.permute.xlu0 %410
        %412 = vrot.lane.b32.xlu0 %v349, 126
        %v413 = vpop.permute.xlu0 %412
        %414 = vrot.lane.b32.xlu0 %v351, 126
        %v415 = vpop.permute.xlu0 %414
        %v424 = vadd.f32 %v392, %v401
        %v425 = vadd.f32 %v393, %v403
        %v426 = vadd.f32 %v394, %v405
        %v427 = vadd.f32 %v395, %v407
        %v428 = vadd.f32 %v396, %v409
        %v429 = vadd.f32 %v397, %v411
        %v430 = vadd.f32 %v398, %v413
        %v431 = vadd.f32 %v399, %v415
        %v432 = vld [vmem:[%s1] sm:$0xff]
        %v433 = vld [vmem:[%s1 + $0x8] sm:$0xff]
        %v434 = vmul.f32 %v424, %v432
        %v435 = vmul.f32 %v425, %v433
        %v436 = vmul.f32 %v426, %v432
        %v437 = vmul.f32 %v427, %v433
        %v438 = vmul.f32 %v428, %v432
        %v439 = vmul.f32 %v429, %v433
        %v440 = vmul.f32 %v430, %v432
        %v441 = vmul.f32 %v431, %v433
        %vm442 = vcmask 130048
        %443 = vst.msk [vmem:[%s136] sm:$0xff] %vm442, %v434
        %444 = vst.msk [vmem:[%s136 + $0x8] sm:$0xff] %vm442, %v435
        %445 = vst.msk [vmem:[%s136 + $0x10] sm:$0xff] %vm442, %v436
        %446 = vst.msk [vmem:[%s136 + $0x18] sm:$0xff] %vm442, %v437
        %447 = vst.msk [vmem:[%s136 + $0x20] sm:$0xff] %vm442, %v438
        %448 = vst.msk [vmem:[%s136 + $0x28] sm:$0xff] %vm442, %v439
        %449 = vst.msk [vmem:[%s136 + $0x30] sm:$0xff] %vm442, %v440
        %450 = vst.msk [vmem:[%s136 + $0x38] sm:$0xff] %vm442, %v441
        %s451 = sand.u32 %s71, 1
        %s452 = scalar_lea.sflag [#allocation3], %s451
        %s453 = sand.u32 %s71, 1
        %s454 = smul.addr %s453, 64
        %s455 = scalar_lea.vmem [#allocation2], %s454
        // Predicated region
        $region29: #{avgpool_forward.1} parent=27 // pred_check
          %p456 = pneg %p81
        $region30: #{avgpool_forward.1} parent=27 // pred_check_branch
          %458 = sbr.rel (%p456) target = $region32
        $region31: #{avgpool_forward.1} parent=27 // pred_region
          %s460 = ssub.s32 1024, 1024
          %461 = vsyncadd %s452, %s460
          %s462 = smul.addr %s16, 8
          %s463 = smul.addr %s462, 128
          %s464 = scalar_lea.hbm %s2, %s463
          %s465 = sshll.u32 %s455, 4
          %s466 = int_to_ptr.vmem [resolvable:$true] %s465
          %471 = dma.vmem_to_hbm [thread:$0]  %s466, 1024, %s464, %s452, 128, 128, 8
        $region32: #{avgpool_forward.1} parent=27 // pred_fallthru
          _
      $region28: #{avgpool_forward.1} parent=5 // pred_fallthru
        _
      %p472 = scmp.le.s32.totalorder 2, %s11
      // Predicated region
      $region33: #{avgpool_forward.1} parent=5 // pred_check
        %p473 = pneg %p472
      $region34: #{avgpool_forward.1} parent=5 // pred_check_branch
        %475 = sbr.rel (%p473) target = $region36
      $region35: #{avgpool_forward.1} parent=5 // pred_region
        %s476 = ssub.s32 %s11, 2
        // Predicated region
        $region37: #{avgpool_forward.1} parent=35 // pred_check
          %p477 = pneg %p87
        $region38: #{avgpool_forward.1} parent=35 // pred_check_branch
          %479 = sbr.rel (%p477) target = $region40
        $region39: #{avgpool_forward.1} parent=35 // pred_region
          %s480 = sand.u32 %s72, 1
          %s481 = scalar_lea.sflag [#allocation3], %s480
          %s482 = sand.u32 %s72, 1
          %s483 = smul.addr %s482, 64
          %s484 = scalar_lea.vmem [#allocation2], %s483
          %485 = dma.done %s481, 1024
        $region40: #{avgpool_forward.1} parent=35 // pred_fallthru
          _
      $region36: #{avgpool_forward.1} parent=5 // pred_fallthru
        _
    $region6: #{avgpool_forward.1} parent=1 // loop_footer
      %s15 = sadd.s32 1, %s11
    $region7: #{avgpool_forward.1} parent=1 // loop_footer_branch
      %10 = sbr.rel target = $region3
    $region8: #{avgpool_forward.1} parent=1 // loop_exit
      _
    %486 = vsyncpa [#allocation3], 1
    %s487 = scalar_lea.sflag [#allocation3], 1
    %488 = vsyncpa %s487, 1

</llo_original>
